<compile_context>
chip_gen: v5e
topology: v5e:2x2
jax: 0.10.0
libtpu: 0.0.40
codegen_flags: <defaults>
</compile_context>

<pallas_src>
import jax
import jax.numpy as jnp
from jax import lax
from jax.experimental import pallas as pl
from jax.experimental.pallas import tpu as pltpu


# ----------------------------------------------------------------------------
# Tile-size helpers
# ----------------------------------------------------------------------------
def _pick_row_tile(n_rows, max_tile=512):
    """Row tile for the input projection: divisible by 8 (sublane) or full."""
    if n_rows <= max_tile:
        return n_rows
    t = max_tile - (max_tile % 8)
    while t >= 8:
        if n_rows % t == 0:
            return t
        t -= 8
    return n_rows  # fall back to one full block


def _pick_time_tile(t_len, max_tile=32):
    """Largest divisor of T that is <= max_tile (time-axis blocking factor)."""
    best = 1
    for t in range(1, min(t_len, max_tile) + 1):
        if t_len % t == 0:
            best = t
    return best


# ----------------------------------------------------------------------------
# Hoisted input projection: gates_x = x @ W_ih^T + (b_ih + b_hh)
# ----------------------------------------------------------------------------
def _input_proj_kernel(x_ref, w_ref, b_ref, g_ref):
    g_ref[...] = (
        jnp.dot(x_ref[...], w_ref[...], preferred_element_type=jnp.float32)
        + b_ref[...]
    ).astype(g_ref.dtype)


def _input_projection(x_seq, w_ih_t, bias):
    """x_seq: (T, B, H_in) -> gates_x (T, B, 4H) in float32."""
    T, B, H_in = x_seq.shape
    G = w_ih_t.shape[1]                       # 4H
    x2d = x_seq.reshape(T * B, H_in)
    tm = _pick_row_tile(T * B)

    gates = pl.pallas_call(
        _input_proj_kernel,
        out_shape=jax.ShapeDtypeStruct((T * B, G), jnp.float32),
        grid_spec=pltpu.PrefetchScalarGridSpec(
            num_scalar_prefetch=0,
            grid=(pl.cdiv(T * B, tm),),
            in_specs=[
                pl.BlockSpec((tm, H_in), lambda i: (i, 0)),   # x rows (streamed)
                pl.BlockSpec((H_in, G), lambda i: (0, 0)),    # W_ih^T (resident)
                pl.BlockSpec((1, G), lambda i: (0, 0)),       # fused bias
            ],
            out_specs=pl.BlockSpec((tm, G), lambda i: (i, 0)),
        ),
        compiler_params=pltpu.CompilerParams(
            # Time-independent -> embarrassingly parallel; on v7x this axis
            # shards across the 2 TensorCores.
            dimension_semantics=("parallel",),
        ),
    )(x2d, w_ih_t, bias)
    return gates.reshape(T, B, G)


# ----------------------------------------------------------------------------
# Recurrent kernel: per time block, run TT LSTM steps with VMEM-resident state
# ----------------------------------------------------------------------------
def _lstm_recurrent_kernel(gx_ref, whh_ref, h0_ref, c0_ref,
                           y_ref, hn_ref, cn_ref, h_sc, c_sc):
    tb = pl.program_id(0)
    TT = y_ref.shape[0]
    H = h_sc.shape[-1]

    @pl.when(tb == 0)
    def _():
        h_sc[...] = h0_ref[...].astype(jnp.float32)
        c_sc[...] = c0_ref[...].astype(jnp.float32)

    whh = whh_ref[...]                        # (H, 4H), hoisted out of the loop

    def step(t, carry):
        h_prev = h_sc[...]
        gates = gx_ref[t] + jnp.dot(
            h_prev.astype(whh.dtype), whh, preferred_element_type=jnp.float32)
        # PyTorch gate order: i, f, g, o
        i = jax.nn.sigmoid(gates[:, 0 * H:1 * H])
        f = jax.nn.sigmoid(gates[:, 1 * H:2 * H])
        g = jnp.tanh(gates[:, 2 * H:3 * H])
        o = jax.nn.sigmoid(gates[:, 3 * H:4 * H])
        c_new = f * c_sc[...] + i * g
        h_new = o * jnp.tanh(c_new)
        c_sc[...] = c_new
        h_sc[...] = h_new
        y_ref[t] = h_new.astype(y_ref.dtype)
        return carry

    # Unrolled so the LLO scheduler sees all TT steps at once.
    lax.fori_loop(0, TT, step, 0, unroll=True)

    # Refresh the (constant-index, VMEM-resident) hn/cn blocks every grid step
    # so they are never garbage; only the final state is ever written back.
    hn_ref[...] = h_sc[...].astype(hn_ref.dtype)
    cn_ref[...] = c_sc[...].astype(cn_ref.dtype)


def _lstm_layer(gates_x, w_hh_t, h0, c0, out_dtype):
    """One LSTM layer over the full sequence, given precomputed input gates.

    gates_x: (T, B, 4H) float32  == x @ W_ih^T + (b_ih + b_hh)
    w_hh_t:  (H, 4H)             == PyTorch weight_hh_l{k}.T
    h0, c0:  (B, H)
    returns y_seq (T, B, H), h_n (B, H), c_n (B, H)
    """
    T, B, G = gates_x.shape
    H = h0.shape[-1]
    tt = _pick_time_tile(T)

    grid_spec = pltpu.PrefetchScalarGridSpec(
        num_scalar_prefetch=0,
        grid=(T // tt,),
        in_specs=[
            pl.BlockSpec((tt, B, G), lambda t: (t, 0, 0)),    # gates_x (streamed)
            pl.BlockSpec((H, G), lambda t: (0, 0)),           # W_hh^T (resident)
            pl.BlockSpec((B, H), lambda t: (0, 0)),           # h0 (resident)
            pl.BlockSpec((B, H), lambda t: (0, 0)),           # c0 (resident)
        ],
        out_specs=[
            pl.BlockSpec((tt, B, H), lambda t: (t, 0, 0)),    # y (streamed)
            pl.BlockSpec((B, H), lambda t: (0, 0)),           # h_n (resident)
            pl.BlockSpec((B, H), lambda t: (0, 0)),           # c_n (resident)
        ],
        scratch_shapes=[
            pltpu.VMEM((B, H), jnp.float32),                  # h state
            pltpu.VMEM((B, H), jnp.float32),                  # c state
        ],
    )

    return pl.pallas_call(
        _lstm_recurrent_kernel,
        out_shape=(
            jax.ShapeDtypeStruct((T, B, H), out_dtype),
            jax.ShapeDtypeStruct((B, H), out_dtype),
            jax.ShapeDtypeStruct((B, H), out_dtype),
        ),
        grid_spec=grid_spec,
        compiler_params=pltpu.CompilerParams(
            # Time is a true recurrence -> must stay a sequential grid axis.
            dimension_semantics=("arbitrary",),
        ),
    )(gates_x, w_hh_t, h0, c0)


# ----------------------------------------------------------------------------
# Module-level wrapper
# ----------------------------------------------------------------------------
def prepare_timeseries_encoder_params(layer_params):
    """One-time layout plumbing (do NOT redo per forward call).

    layer_params: list of (w_ih (4H,H_in), w_hh (4H,H), b_ih (4H,), b_hh (4H,))
                  in PyTorch layout, one tuple per layer.
    returns list of (w_ih_t (H_in,4H), w_hh_t (H,4H), bias (1,4H)).
    """
    prepared = []
    for (w_ih, w_hh, b_ih, b_hh) in layer_params:
        prepared.append((
            jnp.asarray(w_ih).T,                               # (H_in, 4H)
            jnp.asarray(w_hh).T,                               # (H, 4H)
            (jnp.asarray(b_ih) + jnp.asarray(b_hh))[None, :],  # (1, 4H)
        ))
    return prepared


def timeseries_encoder_forward(x, h, prepared_params):
    """Pallas equivalent of TimeSeriesEncoder.forward(x, h) == nn.LSTM(x, h).

    x: (T, B, H); h = (h0, c0) each (L, B, H)
    prepared_params: output of prepare_timeseries_encoder_params().
    """
    h0, c0 = h
    L = h0.shape[0]
    y = x
    h_out, c_out = [], []
    for l in range(L):
        w_ih_t, w_hh_t, bias = prepared_params[l]
        gates_x = _input_projection(y, w_ih_t, bias)           # hoisted matmul
        y, h_l, c_l = _lstm_layer(gates_x, w_hh_t, h0[l], c0[l], x.dtype)
        h_out.append(h_l)
        c_out.append(c_l)
    # TODO(synk): inter-layer dropout (training-only) intentionally omitted.
    return y, (jnp.stack(h_out), jnp.stack(c_out))


# ----------------------------------------------------------------------------
# Pure-JAX reference (PyTorch LSTM equations, i,f,g,o gate order)
# ----------------------------------------------------------------------------
def _lstm_ref(x, h0, c0, layer_params):
    L = h0.shape[0]
    y = x
    hn, cn = [], []
    for l in range(L):
        w_ih, w_hh, b_ih, b_hh = layer_params[l]
        H = w_hh.shape[1]

        def step(carry, x_t, w_ih=w_ih, w_hh=w_hh, b_ih=b_ih, b_hh=b_hh, H=H):
            hh, cc = carry
            gates = (jnp.dot(x_t, w_ih.T, precision=jax.lax.Precision.HIGHEST)
                     + b_ih
                     + jnp.dot(hh, w_hh.T, precision=jax.lax.Precision.HIGHEST)
                     + b_hh)
            i = jax.nn.sigmoid(gates[:, 0 * H:1 * H])
            f = jax.nn.sigmoid(gates[:, 1 * H:2 * H])
            g = jnp.tanh(gates[:, 2 * H:3 * H])
            o = jax.nn.sigmoid(gates[:, 3 * H:4 * H])
            cc = f * cc + i * g
            hh = o * jnp.tanh(cc)
            return (hh, cc), hh

        (h_l, c_l), y = jax.lax.scan(step, (h0[l], c0[l]), y)
        hn.append(h_l)
        cn.append(c_l)
    return y, (jnp.stack(hn), jnp.stack(cn))


if __name__ == "__main__":
    # Small deterministic example: T=8 steps, batch(num_node) B=8, nhid=128, 2 layers.
    key = jax.random.PRNGKey(0)
    T, B, H, L = 8, 8, 128, 2

    keys = jax.random.split(key, 3 + 4 * L)
    x = jax.random.normal(keys[0], (T, B, H), dtype=jnp.float32) * 0.5
    h0 = jax.random.normal(keys[1], (L, B, H), dtype=jnp.float32) * 0.5
    c0 = jax.random.normal(keys[2], (L, B, H), dtype=jnp.float32) * 0.5

    scale = 1.0 / float(jnp.sqrt(H))
    layer_params = []
    for l in range(L):
        k = keys[3 + 4 * l: 3 + 4 * (l + 1)]
        w_ih = jax.random.uniform(k[0], (4 * H, H), jnp.float32, -scale, scale)
        w_hh = jax.random.uniform(k[1], (4 * H, H), jnp.float32, -scale, scale)
        b_ih = jax.random.uniform(k[2], (4 * H,), jnp.float32, -scale, scale)
        b_hh = jax.random.uniform(k[3], (4 * H,), jnp.float32, -scale, scale)
        layer_params.append((w_ih, w_hh, b_ih, b_hh))

    prepared = prepare_timeseries_encoder_params(layer_params)

    y, (hn, cn) = timeseries_encoder_forward(x, (h0, c0), prepared)
    y = jax.block_until_ready(y)

    y_ref, (hn_ref, cn_ref) = _lstm_ref(x, h0, c0, layer_params)

    assert y.shape == (T, B, H), (y.shape, (T, B, H))
    assert hn.shape == (L, B, H) and cn.shape == (L, B, H)
    assert jnp.allclose(y, y_ref, atol=5e-3, rtol=5e-3), float(
        jnp.max(jnp.abs(y - y_ref)))
    assert jnp.allclose(hn, hn_ref, atol=5e-3, rtol=5e-3), float(
        jnp.max(jnp.abs(hn - hn_ref)))
    assert jnp.allclose(cn, cn_ref, atol=5e-3, rtol=5e-3), float(
        jnp.max(jnp.abs(cn - cn_ref)))

    print("KERNEL_OK")
</pallas_src>

<mosaic_0001>
module attributes {stable_mosaic.version = 11 : i64} {
  func.func @_input_proj_kernel(%arg0: i32, %arg1: memref<64x128xf32, #tpu.memory_space<vmem>>, %arg2: memref<128x512xf32, #tpu.memory_space<vmem>>, %arg3: memref<1x512xf32, #tpu.memory_space<vmem>>, %arg4: memref<64x512xf32, #tpu.memory_space<vmem>>) attributes {dimension_semantics = [#tpu.dimension_semantics<parallel>], iteration_bounds = array<i64: 1>, scalar_prefetch = 0 : i64, scratch_operands = 0 : i64, tpu.core_type = #tpu.core_type<tc>, window_params = [{transform_indices = @transform_0, window_bounds = array<i64: 64, 128>}, {pipeline_mode = #tpu.pipeline_mode<synchronous>, transform_indices = @transform_1, window_bounds = array<i64: 128, 512>}, {pipeline_mode = #tpu.pipeline_mode<synchronous>, transform_indices = @transform_2, window_bounds = array<i64: 1, 512>}, {transform_indices = @transform_3, window_bounds = array<i64: 64, 512>}]} {
    %c0 = arith.constant 0 : index
    %c0_0 = arith.constant 0 : index
    %0 = vector.load %arg1[%c0, %c0_0] : memref<64x128xf32, #tpu.memory_space<vmem>>, vector<64x128xf32>
    %c0_1 = arith.constant 0 : index
    %c0_2 = arith.constant 0 : index
    %1 = vector.load %arg2[%c0_1, %c0_2] : memref<128x512xf32, #tpu.memory_space<vmem>>, vector<128x512xf32>
    %cst = arith.constant dense<0.000000e+00> : vector<64x512xf32>
    %2 = tpu.matmul %0, %1, %cst {dimension_numbers = #tpu.dot_dimension_numbers<[1], [0], [0], [1], [0, 0, 1, 1], [], []>} : vector<64x128xf32>, vector<128x512xf32>, vector<64x512xf32> -> vector<64x512xf32>
    %c0_3 = arith.constant 0 : index
    %c0_4 = arith.constant 0 : index
    %3 = vector.load %arg3[%c0_3, %c0_4] : memref<1x512xf32, #tpu.memory_space<vmem>>, vector<1x512xf32>
    %4 = vector.broadcast %3 : vector<1x512xf32> to vector<64x512xf32>
    %5 = arith.addf %2, %4 : vector<64x512xf32>
    %c0_5 = arith.constant 0 : index
    %c0_6 = arith.constant 0 : index
    %6 = vector.load %arg4[%c0_5, %c0_6] : memref<64x512xf32, #tpu.memory_space<vmem>>, vector<64x512xf32>
    tpu.vector_store %arg4[%c0_5, %c0_6], %5 {strides = array<i32>} : memref<64x512xf32, #tpu.memory_space<vmem>>, vector<64x512xf32>,
    return
  }
  func.func @transform_0(%arg0: i32) -> (i32, i32) {
    %c0_i32 = arith.constant 0 : i32
    %c0_i32_0 = arith.constant 0 : i32
    return %arg0, %c0_i32 : i32, i32
  }
  func.func @transform_1(%arg0: i32) -> (i32, i32) {
    %c0_i32 = arith.constant 0 : i32
    %c0_i32_0 = arith.constant 0 : i32
    %c0_i32_1 = arith.constant 0 : i32
    return %c0_i32, %c0_i32_0 : i32, i32
  }
  func.func @transform_2(%arg0: i32) -> (i32, i32) {
    %c0_i32 = arith.constant 0 : i32
    %c0_i32_0 = arith.constant 0 : i32
    %c0_i32_1 = arith.constant 0 : i32
    return %c0_i32, %c0_i32_0 : i32, i32
  }
  func.func @transform_3(%arg0: i32) -> (i32, i32) {
    %c0_i32 = arith.constant 0 : i32
    %c0_i32_0 = arith.constant 0 : i32
    return %arg0, %c0_i32 : i32, i32
  }
}

</mosaic_0001>

<llo_original>
// kernel: tpu_custom_call.1
$region0: #{tpu_custom_call.1}
  #allocation0 [shape = 'u32[]', space=smem, size = 0x4, offset = 0x4, fixed_abs, tag = 'smem constant byte address 0x4 - core index']
  #allocation1 [shape = 'u32[72,128]{1,0:T(1,128)}', space=vmem, size = 0x9000, scoped, tag = 'internal scratch']
  %s0 = inlined_call_operand.hbm [shape: f32[64,128], index: 0, kind: input, shape index: {}]
  %s1 = inlined_call_operand.hbm [shape: f32[128,512], index: 1, kind: input, shape index: {}]
  %s2 = inlined_call_operand.hbm [shape: f32[1,512], index: 2, kind: input, shape index: {}]
  %s3 = inlined_call_operand.hbm [shape: f32[64,512], index: 3, kind: output, shape index: {}]
  %s4 = sld [smem:[#allocation0]]
  $region34: #{tpu_custom_call.1} parent=0
    _
  %s6 = ssub.s32 1, %s4
  %s7 = scalar_select 0, %s6, %s4
  $region1: #{tpu_custom_call.1} parent=0
    #allocation2 [shape = 'u8[32768]{0}', space=vmem, size = 0x8000, scoped, tag = 'input window, operand 0, single buffered']
    #allocation3 [shape = 's32[1]{0}', space=sflag, size = 0x4, scoped, tag = 'scoped memory for tpu_custom_call.1']
    #allocation4 [shape = 's32[1]{0}', space=sflag, size = 0x4, scoped, tag = 'scoped memory for tpu_custom_call.1']
    #allocation5 [shape = 'u8[262144]{0}', space=vmem, size = 0x40000, scoped, tag = 'input window, operand 1, single buffered']
    #allocation6 [shape = 's32[1]{0}', space=sflag, size = 0x4, scoped, tag = 'scoped memory for tpu_custom_call.1']
    #allocation7 [shape = 'u8[2048]{0}', space=vmem, size = 0x800, scoped, tag = 'input window, operand 2, single buffered']
    #allocation8 [shape = 'u8[131072]{0}', space=vmem, size = 0x20000, scoped, tag = 'output window, operand 0, single buffered']
    %8 = vsyncpa [#allocation3], 0
    %9 = vsyncpa [#allocation6], 0
    %10 = vsyncpa [#allocation4], 0
    // Predicated region
    $region2: #{tpu_custom_call.1} parent=1 // pred_check
      _
    $region3: #{tpu_custom_call.1} parent=1 // pred_check_branch
      %12 = sbr.rel (0) target = $region5
    $region4: #{tpu_custom_call.1} parent=1 // pred_region
      %14 = vsyncadd [#allocation3], 0
      %s15 = sshll.u32 %s0, 4
      %s16 = int_to_ptr.hbm [resolvable:$true] %s15
      %s17 = sshll.u32 [#allocation2], 4
      %s18 = int_to_ptr.vmem [resolvable:$true] %s17
      %23 = dma.hbm_to_vmem [thread:$0]  %s16, 1024, %s18, [#allocation3], 128, 128, 8
    $region5: #{tpu_custom_call.1} parent=1 // pred_fallthru
      _
    // Predicated region
    $region6: #{tpu_custom_call.1} parent=1 // pred_check
      _
    $region7: #{tpu_custom_call.1} parent=1 // pred_check_branch
      %25 = sbr.rel (0) target = $region9
    $region8: #{tpu_custom_call.1} parent=1 // pred_region
      %27 = vsyncadd [#allocation6], 0
      %s28 = sshll.u32 %s1, 4
      %s29 = int_to_ptr.hbm [resolvable:$true] %s28
      %s30 = sshll.u32 [#allocation5], 4
      %s31 = int_to_ptr.vmem [resolvable:$true] %s30
      %36 = dma.hbm_to_vmem [thread:$0]  %s29, 8192, %s31, [#allocation6], 512, 512, 32
    $region9: #{tpu_custom_call.1} parent=1 // pred_fallthru
      _
    // Predicated region
    $region10: #{tpu_custom_call.1} parent=1 // pred_check
      _
    $region11: #{tpu_custom_call.1} parent=1 // pred_check_branch
      %38 = sbr.rel (0) target = $region13
    $region12: #{tpu_custom_call.1} parent=1 // pred_region
      %40 = vsyncadd [#allocation6], 0
      %s42 = sshll.u32 %s2, 4
      %s43 = int_to_ptr.hbm [resolvable:$true] %s42
      %s44 = sshll.u32 [#allocation7], 4
      %s45 = int_to_ptr.vmem [resolvable:$true] %s44
      %47 = dma.hbm_to_vmem [thread:$0]  %s43, 64, %s45, [#allocation6]
    $region13: #{tpu_custom_call.1} parent=1 // pred_fallthru
      _
    // Predicated region
    $region14: #{tpu_custom_call.1} parent=1 // pred_check
      _
    $region15: #{tpu_custom_call.1} parent=1 // pred_check_branch
      %49 = sbr.rel (0) target = $region17
    $region16: #{tpu_custom_call.1} parent=1 // pred_region
      %51 = dma.done [#allocation3], 1024
    $region17: #{tpu_custom_call.1} parent=1 // pred_fallthru
      _
    // Predicated region
    $region18: #{tpu_custom_call.1} parent=1 // pred_check
      _
    $region19: #{tpu_custom_call.1} parent=1 // pred_check_branch
      %53 = sbr.rel (0) target = $region21
    $region20: #{tpu_custom_call.1} parent=1 // pred_region
      %55 = dma.done [#allocation6], 8192
    $region21: #{tpu_custom_call.1} parent=1 // pred_fallthru
      _
    // Predicated region
    $region22: #{tpu_custom_call.1} parent=1 // pred_check
      _
    $region23: #{tpu_custom_call.1} parent=1 // pred_check_branch
      %57 = sbr.rel (0) target = $region25
    $region24: #{tpu_custom_call.1} parent=1 // pred_region
      %59 = dma.done [#allocation6], 64
    $region25: #{tpu_custom_call.1} parent=1 // pred_fallthru
      _
    %v60 = vld [vmem:[#allocation2] sm:$0xff]
    %v61 = vld [vmem:[#allocation2 + $0x8] sm:$0xff]
    %v62 = vld [vmem:[#allocation2 + $0x10] sm:$0xff]
    %v63 = vld [vmem:[#allocation2 + $0x18] sm:$0xff]
    %v64 = vld [vmem:[#allocation2 + $0x20] sm:$0xff]
    %v65 = vld [vmem:[#allocation2 + $0x28] sm:$0xff]
    %v66 = vld [vmem:[#allocation2 + $0x30] sm:$0xff]
    %v67 = vld [vmem:[#allocation2 + $0x38] sm:$0xff]
    %v68 = vld [vmem:[#allocation5] sm:$0xff]
    %v69 = vld [vmem:[#allocation5 + $0x8] sm:$0xff]
    %v70 = vld [vmem:[#allocation5 + $0x10] sm:$0xff]
    %v71 = vld [vmem:[#allocation5 + $0x18] sm:$0xff]
    %v72 = vld [vmem:[#allocation5 + $0x20] sm:$0xff]
    %v73 = vld [vmem:[#allocation5 + $0x28] sm:$0xff]
    %v74 = vld [vmem:[#allocation5 + $0x30] sm:$0xff]
    %v75 = vld [vmem:[#allocation5 + $0x38] sm:$0xff]
    %v76 = vld [vmem:[#allocation5 + $0x40] sm:$0xff]
    %v77 = vld [vmem:[#allocation5 + $0x48] sm:$0xff]
    %v78 = vld [vmem:[#allocation5 + $0x50] sm:$0xff]
    %v79 = vld [vmem:[#allocation5 + $0x58] sm:$0xff]
    %v80 = vld [vmem:[#allocation5 + $0x60] sm:$0xff]
    %v81 = vld [vmem:[#allocation5 + $0x68] sm:$0xff]
    %v82 = vld [vmem:[#allocation5 + $0x70] sm:$0xff]
    %v83 = vld [vmem:[#allocation5 + $0x78] sm:$0xff]
    %v84 = vld [vmem:[#allocation5 + $0x80] sm:$0xff]
    %v85 = vld [vmem:[#allocation5 + $0x88] sm:$0xff]
    %v86 = vld [vmem:[#allocation5 + $0x90] sm:$0xff]
    %v87 = vld [vmem:[#allocation5 + $0x98] sm:$0xff]
    %v88 = vld [vmem:[#allocation5 + $0xa0] sm:$0xff]
    %v89 = vld [vmem:[#allocation5 + $0xa8] sm:$0xff]
    %v90 = vld [vmem:[#allocation5 + $0xb0] sm:$0xff]
    %v91 = vld [vmem:[#allocation5 + $0xb8] sm:$0xff]
    %v92 = vld [vmem:[#allocation5 + $0xc0] sm:$0xff]
    %v93 = vld [vmem:[#allocation5 + $0xc8] sm:$0xff]
    %v94 = vld [vmem:[#allocation5 + $0xd0] sm:$0xff]
    %v95 = vld [vmem:[#allocation5 + $0xd8] sm:$0xff]
    %v96 = vld [vmem:[#allocation5 + $0xe0] sm:$0xff]
    %v97 = vld [vmem:[#allocation5 + $0xe8] sm:$0xff]
    %v98 = vld [vmem:[#allocation5 + $0xf0] sm:$0xff]
    %v99 = vld [vmem:[#allocation5 + $0xf8] sm:$0xff]
    %v100 = vld [vmem:[#allocation5 + $0x100] sm:$0xff]
    %v101 = vld [vmem:[#allocation5 + $0x108] sm:$0xff]
    %v102 = vld [vmem:[#allocation5 + $0x110] sm:$0xff]
    %v103 = vld [vmem:[#allocation5 + $0x118] sm:$0xff]
    %v104 = vld [vmem:[#allocation5 + $0x120] sm:$0xff]
    %v105 = vld [vmem:[#allocation5 + $0x128] sm:$0xff]
    %v106 = vld [vmem:[#allocation5 + $0x130] sm:$0xff]
    %v107 = vld [vmem:[#allocation5 + $0x138] sm:$0xff]
    %v108 = vld [vmem:[#allocation5 + $0x140] sm:$0xff]
    %v109 = vld [vmem:[#allocation5 + $0x148] sm:$0xff]
    %v110 = vld [vmem:[#allocation5 + $0x150] sm:$0xff]
    %v111 = vld [vmem:[#allocation5 + $0x158] sm:$0xff]
    %v112 = vld [vmem:[#allocation5 + $0x160] sm:$0xff]
    %v113 = vld [vmem:[#allocation5 + $0x168] sm:$0xff]
    %v114 = vld [vmem:[#allocation5 + $0x170] sm:$0xff]
    %v115 = vld [vmem:[#allocation5 + $0x178] sm:$0xff]
    %v116 = vld [vmem:[#allocation5 + $0x180] sm:$0xff]
    %v117 = vld [vmem:[#allocation5 + $0x188] sm:$0xff]
    %v118 = vld [vmem:[#allocation5 + $0x190] sm:$0xff]
    %v119 = vld [vmem:[#allocation5 + $0x198] sm:$0xff]
    %v120 = vld [vmem:[#allocation5 + $0x1a0] sm:$0xff]
    %v121 = vld [vmem:[#allocation5 + $0x1a8] sm:$0xff]
    %v122 = vld [vmem:[#allocation5 + $0x1b0] sm:$0xff]
    %v123 = vld [vmem:[#allocation5 + $0x1b8] sm:$0xff]
    %v124 = vld [vmem:[#allocation5 + $0x1c0] sm:$0xff]
    %v125 = vld [vmem:[#allocation5 + $0x1c8] sm:$0xff]
    %v126 = vld [vmem:[#allocation5 + $0x1d0] sm:$0xff]
    %v127 = vld [vmem:[#allocation5 + $0x1d8] sm:$0xff]
    %v128 = vld [vmem:[#allocation5 + $0x1e0] sm:$0xff]
    %v129 = vld [vmem:[#allocation5 + $0x1e8] sm:$0xff]
    %v130 = vld [vmem:[#allocation5 + $0x1f0] sm:$0xff]
    %v131 = vld [vmem:[#allocation5 + $0x1f8] sm:$0xff]
    %v132 = vld [vmem:[#allocation7] sm:$0xf]
    %v134 = vperm.slane %v132, 0
    %v135 = vperm.slane %v132, 1
    %v136 = vperm.slane %v132, 2
    %v137 = vperm.slane %v132, 3
    %142 = vmatpush.msra.mxu0 %v128
    %143 = vmatpush.msra.mxu0 %v124
    %144 = vmatpush.msra.mxu0 %v120
    %145 = vmatpush.msra.mxu0 %v116
    %146 = vmatpush.msra.mxu0 %v112
    %147 = vmatpush.msra.mxu0 %v108
    %148 = vmatpush.msra.mxu0 %v104
    %149 = vmatpush.msra.mxu0 %v100
    %150 = vmatpush.msra.mxu0 %v96
    %151 = vmatpush.msra.mxu0 %v92
    %152 = vmatpush.msra.mxu0 %v88
    %153 = vmatpush.msra.mxu0 %v84
    %154 = vmatpush.msra.mxu0 %v80
    %155 = vmatpush.msra.mxu0 %v76
    %156 = vmatpush.msra.mxu0 %v72
    %157 = vmatpush.msra.mxu0 %v68
    %158 = vmatmul.f32.gmra.mxu0 %v60
    %v159 = vpop.f32.mrf.mxu0
    %v160 = vadd.f32 %v134, %v159
    %161 = vmatmul.f32.gmra.mxu0 %v61
    %v162 = vpop.f32.mrf.mxu0
    %v163 = vadd.f32 %v134, %v162
    %164 = vmatmul.f32.gmra.mxu0 %v62
    %v165 = vpop.f32.mrf.mxu0
    %v166 = vadd.f32 %v134, %v165
    %167 = vmatmul.f32.gmra.mxu0 %v63
    %v168 = vpop.f32.mrf.mxu0
    %v169 = vadd.f32 %v134, %v168
    %170 = vmatmul.f32.gmra.mxu0 %v64
    %v171 = vpop.f32.mrf.mxu0
    %v172 = vadd.f32 %v134, %v171
    %173 = vmatmul.f32.gmra.mxu0 %v65
    %v174 = vpop.f32.mrf.mxu0
    %v175 = vadd.f32 %v134, %v174
    %176 = vmatmul.f32.gmra.mxu0 %v66
    %v177 = vpop.f32.mrf.mxu0
    %v178 = vadd.f32 %v134, %v177
    %179 = vmatmul.f32.gmra.mxu0 %v67
    %v180 = vpop.f32.mrf.mxu0
    %v181 = vadd.f32 %v134, %v180
    %182 = vdwg.mxu0
    %183 = vmatpush.msra.mxu0 %v129
    %184 = vmatpush.msra.mxu0 %v125
    %185 = vmatpush.msra.mxu0 %v121
    %186 = vmatpush.msra.mxu0 %v117
    %187 = vmatpush.msra.mxu0 %v113
    %188 = vmatpush.msra.mxu0 %v109
    %189 = vmatpush.msra.mxu0 %v105
    %190 = vmatpush.msra.mxu0 %v101
    %191 = vmatpush.msra.mxu0 %v97
    %192 = vmatpush.msra.mxu0 %v93
    %193 = vmatpush.msra.mxu0 %v89
    %194 = vmatpush.msra.mxu0 %v85
    %195 = vmatpush.msra.mxu0 %v81
    %196 = vmatpush.msra.mxu0 %v77
    %197 = vmatpush.msra.mxu0 %v73
    %198 = vmatpush.msra.mxu0 %v69
    %199 = vmatmul.f32.gmra.mxu0 %v60
    %v200 = vpop.f32.mrf.mxu0
    %v201 = vadd.f32 %v135, %v200
    %202 = vmatmul.f32.gmra.mxu0 %v61
    %v203 = vpop.f32.mrf.mxu0
    %v204 = vadd.f32 %v135, %v203
    %205 = vmatmul.f32.gmra.mxu0 %v62
    %v206 = vpop.f32.mrf.mxu0
    %v207 = vadd.f32 %v135, %v206
    %208 = vmatmul.f32.gmra.mxu0 %v63
    %v209 = vpop.f32.mrf.mxu0
    %v210 = vadd.f32 %v135, %v209
    %211 = vmatmul.f32.gmra.mxu0 %v64
    %v212 = vpop.f32.mrf.mxu0
    %v213 = vadd.f32 %v135, %v212
    %214 = vmatmul.f32.gmra.mxu0 %v65
    %v215 = vpop.f32.mrf.mxu0
    %v216 = vadd.f32 %v135, %v215
    %217 = vmatmul.f32.gmra.mxu0 %v66
    %v218 = vpop.f32.mrf.mxu0
    %v219 = vadd.f32 %v135, %v218
    %220 = vmatmul.f32.gmra.mxu0 %v67
    %v221 = vpop.f32.mrf.mxu0
    %v222 = vadd.f32 %v135, %v221
    %223 = vdwg.mxu0
    %224 = vmatpush.msra.mxu0 %v130
    %225 = vmatpush.msra.mxu0 %v126
    %226 = vmatpush.msra.mxu0 %v122
    %227 = vmatpush.msra.mxu0 %v118
    %228 = vmatpush.msra.mxu0 %v114
    %229 = vmatpush.msra.mxu0 %v110
    %230 = vmatpush.msra.mxu0 %v106
    %231 = vmatpush.msra.mxu0 %v102
    %232 = vmatpush.msra.mxu0 %v98
    %233 = vmatpush.msra.mxu0 %v94
    %234 = vmatpush.msra.mxu0 %v90
    %235 = vmatpush.msra.mxu0 %v86
    %236 = vmatpush.msra.mxu0 %v82
    %237 = vmatpush.msra.mxu0 %v78
    %238 = vmatpush.msra.mxu0 %v74
    %239 = vmatpush.msra.mxu0 %v70
    %240 = vmatmul.f32.gmra.mxu0 %v60
    %v241 = vpop.f32.mrf.mxu0
    %v242 = vadd.f32 %v136, %v241
    %243 = vmatmul.f32.gmra.mxu0 %v61
    %v244 = vpop.f32.mrf.mxu0
    %v245 = vadd.f32 %v136, %v244
    %246 = vmatmul.f32.gmra.mxu0 %v62
    %v247 = vpop.f32.mrf.mxu0
    %v248 = vadd.f32 %v136, %v247
    %249 = vmatmul.f32.gmra.mxu0 %v63
    %v250 = vpop.f32.mrf.mxu0
    %v251 = vadd.f32 %v136, %v250
    %252 = vmatmul.f32.gmra.mxu0 %v64
    %v253 = vpop.f32.mrf.mxu0
    %v254 = vadd.f32 %v136, %v253
    %255 = vmatmul.f32.gmra.mxu0 %v65
    %v256 = vpop.f32.mrf.mxu0
    %v257 = vadd.f32 %v136, %v256
    %258 = vmatmul.f32.gmra.mxu0 %v66
    %v259 = vpop.f32.mrf.mxu0
    %v260 = vadd.f32 %v136, %v259
    %261 = vmatmul.f32.gmra.mxu0 %v67
    %v262 = vpop.f32.mrf.mxu0
    %v263 = vadd.f32 %v136, %v262
    %264 = vdwg.mxu0
    %265 = vmatpush.msra.mxu0 %v131
    %266 = vmatpush.msra.mxu0 %v127
    %267 = vmatpush.msra.mxu0 %v123
    %268 = vmatpush.msra.mxu0 %v119
    %269 = vmatpush.msra.mxu0 %v115
    %270 = vmatpush.msra.mxu0 %v111
    %271 = vmatpush.msra.mxu0 %v107
    %272 = vmatpush.msra.mxu0 %v103
    %273 = vmatpush.msra.mxu0 %v99
    %274 = vmatpush.msra.mxu0 %v95
    %275 = vmatpush.msra.mxu0 %v91
    %276 = vmatpush.msra.mxu0 %v87
    %277 = vmatpush.msra.mxu0 %v83
    %278 = vmatpush.msra.mxu0 %v79
    %279 = vmatpush.msra.mxu0 %v75
    %280 = vmatpush.msra.mxu0 %v71
    %281 = vmatmul.f32.gmra.mxu0 %v60
    %v282 = vpop.f32.mrf.mxu0
    %v283 = vadd.f32 %v137, %v282
    %284 = vmatmul.f32.gmra.mxu0 %v61
    %v285 = vpop.f32.mrf.mxu0
    %v286 = vadd.f32 %v137, %v285
    %287 = vmatmul.f32.gmra.mxu0 %v62
    %v288 = vpop.f32.mrf.mxu0
    %v289 = vadd.f32 %v137, %v288
    %290 = vmatmul.f32.gmra.mxu0 %v63
    %v291 = vpop.f32.mrf.mxu0
    %v292 = vadd.f32 %v137, %v291
    %293 = vmatmul.f32.gmra.mxu0 %v64
    %v294 = vpop.f32.mrf.mxu0
    %v295 = vadd.f32 %v137, %v294
    %296 = vmatmul.f32.gmra.mxu0 %v65
    %v297 = vpop.f32.mrf.mxu0
    %v298 = vadd.f32 %v137, %v297
    %299 = vmatmul.f32.gmra.mxu0 %v66
    %v300 = vpop.f32.mrf.mxu0
    %v301 = vadd.f32 %v137, %v300
    %302 = vmatmul.f32.gmra.mxu0 %v67
    %v303 = vpop.f32.mrf.mxu0
    %v304 = vadd.f32 %v137, %v303
    %305 = vdwg.mxu0
    %306 = vst [vmem:[#allocation8] sm:$0xff] %v160
    %307 = vst [vmem:[#allocation8 + $0x8] sm:$0xff] %v201
    %308 = vst [vmem:[#allocation8 + $0x10] sm:$0xff] %v242
    %309 = vst [vmem:[#allocation8 + $0x18] sm:$0xff] %v283
    %310 = vst [vmem:[#allocation8 + $0x20] sm:$0xff] %v163
    %311 = vst [vmem:[#allocation8 + $0x28] sm:$0xff] %v204
    %312 = vst [vmem:[#allocation8 + $0x30] sm:$0xff] %v245
    %313 = vst [vmem:[#allocation8 + $0x38] sm:$0xff] %v286
    %314 = vst [vmem:[#allocation8 + $0x40] sm:$0xff] %v166
    %315 = vst [vmem:[#allocation8 + $0x48] sm:$0xff] %v207
    %316 = vst [vmem:[#allocation8 + $0x50] sm:$0xff] %v248
    %317 = vst [vmem:[#allocation8 + $0x58] sm:$0xff] %v289
    %318 = vst [vmem:[#allocation8 + $0x60] sm:$0xff] %v169
    %319 = vst [vmem:[#allocation8 + $0x68] sm:$0xff] %v210
    %320 = vst [vmem:[#allocation8 + $0x70] sm:$0xff] %v251
    %321 = vst [vmem:[#allocation8 + $0x78] sm:$0xff] %v292
    %322 = vst [vmem:[#allocation8 + $0x80] sm:$0xff] %v172
    %323 = vst [vmem:[#allocation8 + $0x88] sm:$0xff] %v213
    %324 = vst [vmem:[#allocation8 + $0x90] sm:$0xff] %v254
    %325 = vst [vmem:[#allocation8 + $0x98] sm:$0xff] %v295
    %326 = vst [vmem:[#allocation8 + $0xa0] sm:$0xff] %v175
    %327 = vst [vmem:[#allocation8 + $0xa8] sm:$0xff] %v216
    %328 = vst [vmem:[#allocation8 + $0xb0] sm:$0xff] %v257
    %329 = vst [vmem:[#allocation8 + $0xb8] sm:$0xff] %v298
    %330 = vst [vmem:[#allocation8 + $0xc0] sm:$0xff] %v178
    %331 = vst [vmem:[#allocation8 + $0xc8] sm:$0xff] %v219
    %332 = vst [vmem:[#allocation8 + $0xd0] sm:$0xff] %v260
    %333 = vst [vmem:[#allocation8 + $0xd8] sm:$0xff] %v301
    %334 = vst [vmem:[#allocation8 + $0xe0] sm:$0xff] %v181
    %335 = vst [vmem:[#allocation8 + $0xe8] sm:$0xff] %v222
    %336 = vst [vmem:[#allocation8 + $0xf0] sm:$0xff] %v263
    %337 = vst [vmem:[#allocation8 + $0xf8] sm:$0xff] %v304
    // Predicated region
    $region26: #{tpu_custom_call.1} parent=1 // pred_check
      _
    $region27: #{tpu_custom_call.1} parent=1 // pred_check_branch
      %339 = sbr.rel (0) target = $region29
    $region28: #{tpu_custom_call.1} parent=1 // pred_region
      %341 = vsyncadd [#allocation4], 0
      %s342 = sshll.u32 [#allocation8], 4
      %s343 = int_to_ptr.vmem [resolvable:$true] %s342
      %s344 = sshll.u32 %s3, 4
      %s345 = int_to_ptr.hbm [resolvable:$true] %s344
      %350 = dma.vmem_to_hbm [thread:$0]  %s343, 4096, %s345, [#allocation4], 512, 512, 32
    $region29: #{tpu_custom_call.1} parent=1 // pred_fallthru
      _
    // Predicated region
    $region30: #{tpu_custom_call.1} parent=1 // pred_check
      _
    $region31: #{tpu_custom_call.1} parent=1 // pred_check_branch
      %352 = sbr.rel (0) target = $region33
    $region32: #{tpu_custom_call.1} parent=1 // pred_region
      %354 = dma.done [#allocation4], 4096
    $region33: #{tpu_custom_call.1} parent=1 // pred_fallthru
      _
    %355 = vsyncpa [#allocation3], 1
    %356 = vsyncpa [#allocation6], 1
    %357 = vsyncpa [#allocation4], 1

</llo_original>
